<compile_context>
chip_gen: v5e
topology: v5e:2x2
jax: 0.10.0
libtpu: 0.0.40
codegen_flags: <defaults>
</compile_context>

<pallas_src>
import functools

import jax
import jax.numpy as jnp
from jax.experimental import pallas as pl
from jax.experimental.pallas import tpu as pltpu


def cse_kernel(x_ref, w1t_ref, w2t_ref, o_ref, acc_ref, *,
               hw_total, hw_tile, need_mask):
    # x_ref:   (b_tile, C, hw_tile)  one spatial chunk, NCHW order (HW on lanes)
    # w1t_ref: (C, hidden)           resident across the whole grid
    # w2t_ref: (hidden, C)           resident across the whole grid
    # o_ref:   (b_tile, 1, C)        resident across the hw (reduction) axis
    # acc_ref: (b_tile, C) f32       pooled-sum accumulator (VMEM scratch)
    k = pl.program_id(1)

    @pl.when(k == 0)
    def _init():
        acc_ref[...] = jnp.zeros_like(acc_ref)

    # Partial global-average-pool: lane-axis sum of this spatial chunk,
    # accumulated in f32.  XLU/VPU work is free filler under the DMA bound.
    xb = x_ref[...].astype(jnp.float32)
    if need_mask:  # static: only compiled in when HW % hw_tile != 0
        lane = jax.lax.broadcasted_iota(jnp.int32, xb.shape, dimension=2)
        xb = jnp.where((k * hw_tile + lane) < hw_total, xb, 0.0)
    acc_ref[...] += jnp.sum(xb, axis=-1)

    @pl.when(k == pl.num_programs(1) - 1)
    def _epilogue():
        pooled = acc_ref[...] * (1.0 / float(hw_total))          # (b_tile, C)
        # fc1 (no bias) + ReLU — MXU, weight-dtype operands, f32 accumulation.
        h = jnp.dot(pooled.astype(w1t_ref.dtype), w1t_ref[...],
                    preferred_element_type=jnp.float32)
        h = jnp.maximum(h, 0.0)
        # fc2 (no bias) + sigmoid (logistic rides the EUP slot).
        logits = jnp.dot(h.astype(w2t_ref.dtype), w2t_ref[...],
                         preferred_element_type=jnp.float32)
        o_ref[...] = jax.nn.sigmoid(logits)[:, None, :].astype(o_ref.dtype)


def _vmem_capacity_bytes():
    try:
        return int(pltpu.get_tpu_info().vmem_capacity_bytes)
    except Exception:
        return 64 << 20  # conservative (v7x per-TensorCore)


def _pick_b_tile(B):
    """Largest divisor of B that is <= min(8, B // 2), so the 'parallel' batch
    grid axis has >= 2 steps whenever B >= 2 (keeps both v7x TCs busy)."""
    if B <= 1:
        return 1
    cap = min(8, B // 2)
    for t in range(cap, 0, -1):
        if B % t == 0:
            return t
    return 1


def _pick_hw_tile(hw_total, bytes_per_lane, target_block_bytes):
    """Lane-axis tile: multiple of 128 (or the full extent when HW <= 128),
    sized so one x block is roughly target_block_bytes."""
    if hw_total <= 128:
        return hw_total  # full extent — always a legal trailing block dim
    lanes = max(128, (target_block_bytes // max(int(bytes_per_lane), 1))
                // 128 * 128)
    hw_padded = -(-hw_total // 128) * 128
    return int(min(lanes, hw_padded))


def _x_block_spec(block_shape, index_map, buffers):
    """x BlockSpec with optional deeper buffering (graceful fallback if the
    installed jax doesn't expose pipeline_mode/Buffered)."""
    if buffers is not None:
        try:
            return pl.BlockSpec(block_shape, index_map,
                                pipeline_mode=pl.Buffered(buffers))
        except Exception:
            pass
    return pl.BlockSpec(block_shape, index_map)


def cse_module(x, w1, w2, *, hw_tile=None, target_block_bytes=None):
    """Channel squeeze-and-excitation gates.

    x : (B, C, H, W) NCHW activations (consumed directly, no layout change)
    w1: (hidden, C)  first Linear weight  (PyTorch layout, no bias)
    w2: (C, hidden)  second Linear weight (PyTorch layout, no bias)
    Returns (B, C, 1, 1) sigmoid channel gates, matching CSEModule.forward.
    """
    B, C, H, W = x.shape
    hidden = w1.shape[0]
    HW = H * W

    # Free reshape — keeps NCHW ordering, no HBM round trip.
    x_flat = x.reshape(B, C, HW)
    w1t = jnp.transpose(w1)   # (C, hidden)   tiny
    w2t = jnp.transpose(w2)   # (hidden, C)   tiny

    itemsize = jnp.dtype(x.dtype).itemsize
    w_itemsize = jnp.dtype(w1.dtype).itemsize
    vmem_cap = _vmem_capacity_bytes()

    b_tile = _pick_b_tile(B)
    if target_block_bytes is None:
        # Bigger blocks on 128 MiB-VMEM parts (v5e/v6e); ~8 MiB otherwise.
        target_block_bytes = (16 << 20) if vmem_cap >= (96 << 20) else (8 << 20)
    if hw_tile is None:
        hw_tile = _pick_hw_tile(HW, b_tile * C * itemsize, target_block_bytes)
    assert hw_tile % 128 == 0 or hw_tile == HW, "hw_tile must be 128-aligned"

    need_mask = (HW % hw_tile) != 0
    grid = (B // b_tile, pl.cdiv(HW, hw_tile))

    # Deeper x buffering only pays off (and is only exercised) on longer grids.
    x_buffers = 3 if grid[0] * grid[1] >= 3 else None
    n_x_bufs = x_buffers if x_buffers is not None else 2

    # VMEM budget: x buffers + (double-buffered) resident weights + out + acc,
    # plus headroom; capped at 3/4 of physical capacity.
    # NOTE: the constant-index weight specs keep a redundant second buffer; it
    # is negligible here (a few KiB) — reclaim with Buffered(1) for very large C.
    x_block_bytes = b_tile * C * hw_tile * itemsize
    w_bytes = 2 * 2 * C * hidden * w_itemsize
    o_bytes = 2 * b_tile * C * itemsize
    acc_bytes = b_tile * C * 4
    footprint = n_x_bufs * x_block_bytes + w_bytes + o_bytes + acc_bytes
    cap = int(vmem_cap * 3 // 4)
    vmem_limit = int(min(max(footprint + (2 << 20), 4 << 20),
                         max(cap, footprint + (1 << 20))))

    cost = pl.CostEstimate(
        flops=int(B * HW * C + 4 * B * C * hidden),
        transcendentals=int(B * C),
        bytes_accessed=int(B * HW * C * itemsize
                           + 2 * C * hidden * w_itemsize
                           + B * C * itemsize),
    )

    out = pl.pallas_call(
        functools.partial(cse_kernel, hw_total=HW, hw_tile=hw_tile,
                          need_mask=need_mask),
        out_shape=jax.ShapeDtypeStruct((B, 1, C), x.dtype),
        grid=grid,
        in_specs=[
            _x_block_spec((b_tile, C, hw_tile), lambda b, k: (b, 0, k),
                          x_buffers),
            pl.BlockSpec((C, hidden), lambda b, k: (0, 0)),   # resident weights
            pl.BlockSpec((hidden, C), lambda b, k: (0, 0)),   # resident weights
        ],
        out_specs=pl.BlockSpec((b_tile, 1, C), lambda b, k: (b, 0, 0)),
        scratch_shapes=[pltpu.VMEM((b_tile, C), jnp.float32)],
        compiler_params=pltpu.CompilerParams(
            dimension_semantics=("parallel", "arbitrary"),
            vmem_limit_bytes=vmem_limit,
        ),
        cost_estimate=cost,
    )(x_flat, w1t, w2t)

    # (B, 1, C) -> (B, C, 1, 1) is a pure reshape (same element order).
    return out.reshape(B, C, 1, 1)


def cse_reference(x, w1, w2):
    pooled = jnp.mean(x.astype(jnp.float32), axis=(2, 3))     # (B, C)
    h = jnp.maximum(pooled @ w1.T.astype(jnp.float32), 0.0)   # (B, hidden)
    y = jax.nn.sigmoid(h @ w2.T.astype(jnp.float32))          # (B, C)
    return y.reshape(x.shape[0], x.shape[1], 1, 1).astype(x.dtype)


if __name__ == "__main__":
    # Small shapes consistent with the module: in_planes=128, hidden_ratio=16.
    B, C, H, W = 2, 128, 16, 16
    hidden = C // 16  # 8

    key = jax.random.PRNGKey(0)
    kx, k1, k2 = jax.random.split(key, 3)

    x = jax.random.normal(kx, (B, C, H, W), dtype=jnp.float32)
    # PyTorch Linear stores (out_features, in_features); no biases.
    w1 = jax.random.normal(k1, (hidden, C), dtype=jnp.float32) * (1.0 / (C ** 0.5))
    w2 = jax.random.normal(k2, (C, hidden), dtype=jnp.float32) * (1.0 / (hidden ** 0.5))

    y_ref = cse_reference(x, w1, w2)

    # 1) Default tiling (B split across the parallel axis, single hw chunk).
    y = jax.block_until_ready(cse_module(x, w1, w2))
    assert y.shape == (B, C, 1, 1)
    assert jnp.allclose(y, y_ref, atol=1e-5, rtol=1e-5)

    # 2) hw_tile=128 forces a multi-step streaming reduction over the spatial
    #    axis (exercises accumulator init / accumulate / epilogue + Buffered(3)).
    y2 = jax.block_until_ready(cse_module(x, w1, w2, hw_tile=128))
    assert jnp.allclose(y2, y_ref, atol=1e-5, rtol=1e-5)

    # 3) Ragged spatial extent (14x14 = 196) exercises the masked tail chunk.
    C3 = 64
    h3 = C3 // 16
    x3 = jax.random.normal(kx, (2, C3, 14, 14), dtype=jnp.float32)
    w13 = jax.random.normal(k1, (h3, C3), dtype=jnp.float32) * (1.0 / (C3 ** 0.5))
    w23 = jax.random.normal(k2, (C3, h3), dtype=jnp.float32) * (1.0 / (h3 ** 0.5))
    y3 = jax.block_until_ready(cse_module(x3, w13, w23))
    assert jnp.allclose(y3, cse_reference(x3, w13, w23), atol=1e-5, rtol=1e-5)

    print("KERNEL_OK")
</pallas_src>

<mosaic_0001>
module attributes {stable_mosaic.version = 11 : i64} {
  func.func @cse_kernel(%arg0: i32, %arg1: i32, %arg2: memref<1x128x256xf32, #tpu.memory_space<vmem>>, %arg3: memref<128x8xf32, #tpu.memory_space<vmem>>, %arg4: memref<8x128xf32, #tpu.memory_space<vmem>>, %arg5: memref<1x1x128xf32, #tpu.memory_space<vmem>>, %arg6: memref<1x128xf32, #tpu.memory_space<vmem>>) attributes {dimension_semantics = [#tpu.dimension_semantics<parallel>, #tpu.dimension_semantics<arbitrary>], iteration_bounds = array<i64: 2, 1>, scalar_prefetch = 0 : i64, scratch_operands = 1 : i64, tpu.core_type = #tpu.core_type<tc>, window_params = [{transform_indices = @transform_0, window_bounds = array<i64: 1, 128, 256>}, {pipeline_mode = #tpu.pipeline_mode<synchronous>, transform_indices = @transform_1, window_bounds = array<i64: 128, 8>}, {pipeline_mode = #tpu.pipeline_mode<synchronous>, transform_indices = @transform_2, window_bounds = array<i64: 8, 128>}, {transform_indices = @transform_3, window_bounds = array<i64: 1, 1, 128>}]} {
    %c0_i32 = arith.constant 0 : i32
    %0 = arith.cmpi eq, %arg1, %c0_i32 : i32
    %1 = arith.extui %0 : i1 to i32
    %c0_i32_0 = arith.constant 0 : i32
    %2 = arith.cmpi ne, %1, %c0_i32_0 : i32
    scf.if %2 {
      %cst_9 = arith.constant 0.000000e+00 : f32
      %11 = vector.broadcast %cst_9 : f32 to vector<1x128xf32>
      %c0_10 = arith.constant 0 : index
      %c0_11 = arith.constant 0 : index
      %12 = vector.load %arg6[%c0_10, %c0_11] : memref<1x128xf32, #tpu.memory_space<vmem>>, vector<1x128xf32>
      tpu.vector_store %arg6[%c0_10, %c0_11], %11 {strides = array<i32>} : memref<1x128xf32, #tpu.memory_space<vmem>>, vector<1x128xf32>,
    } else {
    }
    %c0 = arith.constant 0 : index
    %c0_1 = arith.constant 0 : index
    %c0_2 = arith.constant 0 : index
    %3 = vector.load %arg2[%c0, %c0_1, %c0_2] : memref<1x128x256xf32, #tpu.memory_space<vmem>>, vector<1x128x256xf32>
    %c0_3 = arith.constant 0 : index
    %c0_4 = arith.constant 0 : index
    %4 = vector.load %arg6[%c0_3, %c0_4] : memref<1x128xf32, #tpu.memory_space<vmem>>, vector<1x128xf32>
    %cst = arith.constant dense<0.000000e+00> : vector<1x128xf32>
    %5 = vector.multi_reduction <add>, %3, %cst [2] : vector<1x128x256xf32> to vector<1x128xf32>
    %6 = arith.addf %4, %5 : vector<1x128xf32>
    %c0_5 = arith.constant 0 : index
    %c0_6 = arith.constant 0 : index
    %7 = vector.load %arg6[%c0_5, %c0_6] : memref<1x128xf32, #tpu.memory_space<vmem>>, vector<1x128xf32>
    tpu.vector_store %arg6[%c0_5, %c0_6], %6 {strides = array<i32>} : memref<1x128xf32, #tpu.memory_space<vmem>>, vector<1x128xf32>,
    %c0_i32_7 = arith.constant 0 : i32
    %8 = arith.cmpi eq, %arg1, %c0_i32_7 : i32
    %9 = arith.extui %8 : i1 to i32
    %c0_i32_8 = arith.constant 0 : i32
    %10 = arith.cmpi ne, %9, %c0_i32_8 : i32
    scf.if %10 {
      %c0_9 = arith.constant 0 : index
      %c0_10 = arith.constant 0 : index
      %11 = vector.load %arg6[%c0_9, %c0_10] : memref<1x128xf32, #tpu.memory_space<vmem>>, vector<1x128xf32>
      %cst_11 = arith.constant 3.906250e-03 : f32
      %12 = vector.broadcast %cst_11 : f32 to vector<1x128xf32>
      %13 = arith.mulf %11, %12 : vector<1x128xf32>
      %c0_12 = arith.constant 0 : index
      %c0_13 = arith.constant 0 : index
      %14 = vector.load %arg3[%c0_12, %c0_13] : memref<128x8xf32, #tpu.memory_space<vmem>>, vector<128x8xf32>
      %cst_14 = arith.constant dense<0.000000e+00> : vector<1x8xf32>
      %15 = tpu.matmul %13, %14, %cst_14 {dimension_numbers = #tpu.dot_dimension_numbers<[1], [0], [0], [1], [0, 0, 1, 1], [], []>} : vector<1x128xf32>, vector<128x8xf32>, vector<1x8xf32> -> vector<1x8xf32>
      %cst_15 = arith.constant 0.000000e+00 : f32
      %16 = vector.broadcast %cst_15 : f32 to vector<1x8xf32>
      %17 = arith.maximumf %15, %16 : vector<1x8xf32>
      %c0_16 = arith.constant 0 : index
      %c0_17 = arith.constant 0 : index
      %18 = vector.load %arg4[%c0_16, %c0_17] : memref<8x128xf32, #tpu.memory_space<vmem>>, vector<8x128xf32>
      %cst_18 = arith.constant dense<0.000000e+00> : vector<1x128xf32>
      %19 = tpu.matmul %17, %18, %cst_18 {dimension_numbers = #tpu.dot_dimension_numbers<[1], [0], [0], [1], [0, 0, 1, 1], [], []>} : vector<1x8xf32>, vector<8x128xf32>, vector<1x128xf32> -> vector<1x128xf32>
      %20 = arith.negf %19 : vector<1x128xf32>
      %21 = math.exp %20 : vector<1x128xf32>
      %cst_19 = arith.constant 1.000000e+00 : f32
      %22 = vector.broadcast %cst_19 : f32 to vector<1x128xf32>
      %23 = arith.addf %22, %21 : vector<1x128xf32>
      %24 = arith.divf %22, %23 : vector<1x128xf32>
      %25 = vector.shape_cast %24 : vector<1x128xf32> to vector<1x1x128xf32>
      %c0_20 = arith.constant 0 : index
      %c0_21 = arith.constant 0 : index
      %c0_22 = arith.constant 0 : index
      %26 = vector.load %arg5[%c0_20, %c0_21, %c0_22] : memref<1x1x128xf32, #tpu.memory_space<vmem>>, vector<1x1x128xf32>
      tpu.vector_store %arg5[%c0_20, %c0_21, %c0_22], %25 {strides = array<i32>} : memref<1x1x128xf32, #tpu.memory_space<vmem>>, vector<1x1x128xf32>,
    } else {
    }
    return
  }
  func.func @transform_0(%arg0: i32, %arg1: i32) -> (i32, i32, i32) {
    %c0_i32 = arith.constant 0 : i32
    %c0_i32_0 = arith.constant 0 : i32
    return %arg0, %c0_i32, %arg1 : i32, i32, i32
  }
  func.func @transform_1(%arg0: i32, %arg1: i32) -> (i32, i32) {
    %c0_i32 = arith.constant 0 : i32
    %c0_i32_0 = arith.constant 0 : i32
    %c0_i32_1 = arith.constant 0 : i32
    return %c0_i32, %c0_i32_0 : i32, i32
  }
  func.func @transform_2(%arg0: i32, %arg1: i32) -> (i32, i32) {
    %c0_i32 = arith.constant 0 : i32
    %c0_i32_0 = arith.constant 0 : i32
    %c0_i32_1 = arith.constant 0 : i32
    return %c0_i32, %c0_i32_0 : i32, i32
  }
  func.func @transform_3(%arg0: i32, %arg1: i32) -> (i32, i32, i32) {
    %c0_i32 = arith.constant 0 : i32
    %c0_i32_0 = arith.constant 0 : i32
    %c0_i32_1 = arith.constant 0 : i32
    return %arg0, %c0_i32, %c0_i32_0 : i32, i32, i32
  }
}

</mosaic_0001>

<llo_original>
// kernel: tpu_custom_call.1
$region0: #{tpu_custom_call.1}
  #allocation0 [shape = 'u32[]', space=smem, size = 0x4, offset = 0x4, fixed_abs, tag = 'smem constant byte address 0x4 - core index']
  #allocation1 [shape = 'u32[72,128]{1,0:T(1,128)}', space=vmem, size = 0x9000, scoped, tag = 'internal scratch']
  #allocation2 [shape = 'f32[1,128]{1,0:T(1,128)}', space=vmem, size = 0x200, scoped, tag = 'scratch operand']
  %s0 = inlined_call_operand.hbm [shape: f32[2,128,256], index: 0, kind: input, shape index: {}]
  %s1 = inlined_call_operand.vmem [shape: f32[128,8], index: 1, kind: input, shape index: {}]
  %s2 = inlined_call_operand.vmem [shape: f32[8,128], index: 2, kind: input, shape index: {}]
  %s3 = inlined_call_operand.hbm [shape: f32[2,1,128], index: 3, kind: output, shape index: {}]
  %s4 = sld [smem:[#allocation0]]
  $region57: #{tpu_custom_call.1} parent=0
    _
  %s6 = ssub.s32 1, %s4
  %s7 = scalar_select 0, %s6, %s4
  $region1: #{tpu_custom_call.1} parent=0
    #allocation3 [shape = 'u8[262144]{0}', space=vmem, size = 0x40000, scoped, tag = 'input window, operand 0']
    #allocation4 [shape = 's32[2]{0}', space=sflag, size = 0x8, scoped, tag = 'scoped memory for tpu_custom_call.1']
    #allocation5 [shape = 's32[2]{0}', space=sflag, size = 0x8, scoped, tag = 'scoped memory for tpu_custom_call.1']
    #allocation6 [shape = 'u8[1024]{0}', space=vmem, size = 0x400, scoped, tag = 'output window, operand 0']
    %8 = vsyncpa [#allocation4], 0
    %s9 = scalar_lea.sflag [#allocation4], 1
    %10 = vsyncpa %s9, 0
    %11 = vsyncpa [#allocation5], 0
    %s12 = scalar_lea.sflag [#allocation5], 1
    %13 = vsyncpa %s12, 0
    loop: start=0, step=1, limit=4
    $region2: #{tpu_custom_call.1} parent=1 // loop_pre_header
      _
    $region3: #{tpu_custom_call.1} parent=1 // loop_header
      %s15 = sphi 0, %s19
      %p16 = scmp.ge.s32.totalorder %s15, 4
      %s22 = sphi 0, %s34
      %s23 = sphi 0, %s30
      %s24 = sphi 0, %s22
      %s25 = sphi 0, %s23
      %s26 = sphi 0, %s24
      %s27 = sphi 0, %s25
      %s39 = sphi 0, %s41
      %s42 = sphi 0, %s39
      %s43 = sphi 0, %s42
      %s59 = sphi 0, %s43
      %s63 = sphi 0, %s63
      %s65 = sphi 0, %s63
      %s66 = sphi 0, %s65
      %s80 = sphi 0, %s66
      %s84 = sphi 0, %s84
      %s86 = sphi 0, %s84
      %s87 = sphi 0, %s86
      %s101 = sphi 0, %s87
      %s107 = sphi 0, %s109
      %s110 = sphi 0, %s107
      %s111 = sphi 0, %s110
      %s127 = sphi 0, %s111
    $region4: #{tpu_custom_call.1} parent=1 // loop_header_branch
      %18 = sbr.rel (%p16) target = $region8
    $region5: #{tpu_custom_call.1} parent=1 // loop_body
      %s20 = ssub.s32 %s15, 1
      %s21 = ssub.s32 %s15, 2
      %s28 = sadd.s32 1, %s23
      %p29 = scmp.ge.s32.totalorder %s28, 1
      %s30 = scalar_select %p29, 0, %s28
      %s31 = sadd.s32 1, %s22
      %s32 = scalar_select %p29, %s31, %s22
      %p33 = scmp.ge.s32.totalorder %s32, 2
      %s34 = scalar_select %p33, 0, %s32
      %s35 = ssub.s32 %s22, %s34
      %s36 = ssub.s32 %s23, %s30
      %s37 = sor.u32 %s35, %s36
      %p38 = scmp.eq.s32.totalorder %s37, 0
      %s40 = sadd.s32 %s39, 1
      %s41 = scalar_select %p38, %s39, %s40
      %p44 = pneg %p38
      %p45 = scmp.eq.s32.totalorder %s15, 1
      %p46 = por %p44, %p45
      %p47 = scmp.ne.s32.totalorder %s39, %s42
      %p48 = scmp.eq.s32.totalorder %s15, 0
      %p49 = por %p47, %p48
      %p50 = scmp.ne.s32.totalorder %s39, %s42
      %p51 = scmp.eq.s32.totalorder %s20, 1
      %p52 = por %p50, %p51
      %p53 = scmp.ne.s32.totalorder %s42, %s43
      %p54 = scmp.eq.s32.totalorder %s20, 0
      %p55 = por %p53, %p54
      %p56 = scmp.ne.s32.totalorder %s42, %s43
      %p57 = scmp.eq.s32.totalorder %s21, 1
      %p58 = por %p56, %p57
      %p60 = scmp.ne.s32.totalorder %s43, %s59
      %p61 = scmp.eq.s32.totalorder %s21, 0
      %p62 = por %p60, %p61
      %s64 = sadd.s32 %s63, 1
      %p67 = scmp.eq.s32.totalorder %s15, 1
      %p68 = scmp.ne.s32.totalorder %s63, %s65
      %p69 = scmp.eq.s32.totalorder %s15, 0
      %p70 = por %p68, %p69
      %p71 = scmp.ne.s32.totalorder %s63, %s65
      %p72 = scmp.eq.s32.totalorder %s20, 1
      %p73 = por %p71, %p72
      %p74 = scmp.ne.s32.totalorder %s65, %s66
      %p75 = scmp.eq.s32.totalorder %s20, 0
      %p76 = por %p74, %p75
      %p77 = scmp.ne.s32.totalorder %s65, %s66
      %p78 = scmp.eq.s32.totalorder %s21, 1
      %p79 = por %p77, %p78
      %p81 = scmp.ne.s32.totalorder %s66, %s80
      %p82 = scmp.eq.s32.totalorder %s21, 0
      %p83 = por %p81, %p82
      %s85 = sadd.s32 %s84, 1
      %p88 = scmp.eq.s32.totalorder %s15, 1
      %p89 = scmp.ne.s32.totalorder %s84, %s86
      %p90 = scmp.eq.s32.totalorder %s15, 0
      %p91 = por %p89, %p90
      %p92 = scmp.ne.s32.totalorder %s84, %s86
      %p93 = scmp.eq.s32.totalorder %s20, 1
      %p94 = por %p92, %p93
      %p95 = scmp.ne.s32.totalorder %s86, %s87
      %p96 = scmp.eq.s32.totalorder %s20, 0
      %p97 = por %p95, %p96
      %p98 = scmp.ne.s32.totalorder %s86, %s87
      %p99 = scmp.eq.s32.totalorder %s21, 1
      %p100 = por %p98, %p99
      %p102 = scmp.ne.s32.totalorder %s87, %s101
      %p103 = scmp.eq.s32.totalorder %s21, 0
      %p104 = por %p102, %p103
      %s105 = ssub.s32 %s22, %s34
      %p106 = scmp.eq.s32.totalorder %s105, 0
      %s108 = sadd.s32 %s107, 1
      %s109 = scalar_select %p106, %s107, %s108
      %p112 = pneg %p106
      %p113 = scmp.eq.s32.totalorder %s15, 1
      %p114 = por %p112, %p113
      %p115 = scmp.ne.s32.totalorder %s107, %s110
      %p116 = scmp.eq.s32.totalorder %s15, 0
      %p117 = por %p115, %p116
      %p118 = scmp.ne.s32.totalorder %s107, %s110
      %p119 = scmp.eq.s32.totalorder %s20, 1
      %p120 = por %p118, %p119
      %p121 = scmp.ne.s32.totalorder %s110, %s111
      %p122 = scmp.eq.s32.totalorder %s20, 0
      %p123 = por %p121, %p122
      %p124 = scmp.ne.s32.totalorder %s110, %s111
      %p125 = scmp.eq.s32.totalorder %s21, 1
      %p126 = por %p124, %p125
      %p128 = scmp.ne.s32.totalorder %s111, %s127
      %p129 = scmp.eq.s32.totalorder %s21, 0
      %p130 = por %p128, %p129
      %p131 = scmp.le.s32.totalorder 1, %s15
      %p132 = scmp.lt.s32.totalorder %s15, 3
      %p133 = pnand %p131, %p132
      %p134 = pneg %p133
      // Predicated region
      $region9: #{tpu_custom_call.1} parent=5 // pred_check
        _
      $region10: #{tpu_custom_call.1} parent=5 // pred_check_branch
        %136 = sbr.rel (%p133) target = $region12
      $region11: #{tpu_custom_call.1} parent=5 // pred_region
        %s137 = ssub.s32 %s15, 1
        // Predicated region
        $region13: #{tpu_custom_call.1} parent=11 // pred_check
          %p138 = pneg %p76
        $region14: #{tpu_custom_call.1} parent=11 // pred_check_branch
          %140 = sbr.rel (%p138) target = $region16
        $region15: #{tpu_custom_call.1} parent=11 // pred_region
          _
        $region16: #{tpu_custom_call.1} parent=11 // pred_fallthru
          _
        // Predicated region
        $region17: #{tpu_custom_call.1} parent=11 // pred_check
          %p141 = pneg %p97
        $region18: #{tpu_custom_call.1} parent=11 // pred_check_branch
          %143 = sbr.rel (%p141) target = $region20
        $region19: #{tpu_custom_call.1} parent=11 // pred_region
          _
        $region20: #{tpu_custom_call.1} parent=11 // pred_fallthru
          _
      $region12: #{tpu_custom_call.1} parent=5 // pred_fallthru
        _
      %p144 = scmp.lt.s32.totalorder %s15, 2
      // Predicated region
      $region21: #{tpu_custom_call.1} parent=5 // pred_check
        %p145 = pneg %p144
      $region22: #{tpu_custom_call.1} parent=5 // pred_check_branch
        %147 = sbr.rel (%p145) target = $region24
      $region23: #{tpu_custom_call.1} parent=5 // pred_region
        // Predicated region
        $region25: #{tpu_custom_call.1} parent=23 // pred_check
          %p148 = pneg %p49
        $region26: #{tpu_custom_call.1} parent=23 // pred_check_branch
          %150 = sbr.rel (%p148) target = $region28
        $region27: #{tpu_custom_call.1} parent=23 // pred_region
          %s151 = sand.u32 %s39, 1
          %s152 = scalar_lea.sflag [#allocation4], %s151
          %s153 = sand.u32 %s39, 1
          %s154 = smul.addr %s153, 256
          %s155 = scalar_lea.vmem [#allocation3], %s154
          %s156 = smul.u32 2, %s23
          %158 = vsyncadd %s152, 0
          %s159 = smul.addr %s22, 32
          %s160 = sadd.s32 %s156, %s159
          %s161 = smul.addr %s160, 8
          %s162 = scalar_lea.hbm %s0, %s161
          %s163 = sshll.u32 %s162, 4
          %s164 = int_to_ptr.hbm [resolvable:$true] %s163
          %s165 = sshll.u32 %s155, 4
          %s166 = int_to_ptr.vmem [resolvable:$true] %s165
          %171 = dma.hbm_to_vmem [thread:$0]  %s164, 4096, %s166, %s152, 256, 256, 16
        $region28: #{tpu_custom_call.1} parent=23 // pred_fallthru
          _
      $region24: #{tpu_custom_call.1} parent=5 // pred_fallthru
        _
      %p172 = scmp.le.s32.totalorder 1, %s15
      %p173 = scmp.lt.s32.totalorder %s15, 3
      %p174 = pnand %p172, %p173
      %p175 = pneg %p174
      // Predicated region
      $region29: #{tpu_custom_call.1} parent=5 // pred_check
        _
      $region30: #{tpu_custom_call.1} parent=5 // pred_check_branch
        %177 = sbr.rel (%p174) target = $region32
      $region31: #{tpu_custom_call.1} parent=5 // pred_region
        %s178 = ssub.s32 %s15, 1
        %s179 = sand.u32 %s42, 1
        %s180 = scalar_lea.sflag [#allocation4], %s179
        %s181 = sand.u32 %s42, 1
        %s182 = smul.addr %s181, 256
        %s183 = scalar_lea.vmem [#allocation3], %s182
        // Predicated region
        $region33: #{tpu_custom_call.1} parent=31 // pred_check
          %p184 = pneg %p55
        $region34: #{tpu_custom_call.1} parent=31 // pred_check_branch
          %186 = sbr.rel (%p184) target = $region36
        $region35: #{tpu_custom_call.1} parent=31 // pred_region
          %188 = dma.done %s180, 4096
        $region36: #{tpu_custom_call.1} parent=31 // pred_fallthru
          _
        %s189 = sand.u32 %s42, 1
        %s190 = scalar_lea.sflag [#allocation4], %s189
        %s191 = sand.u32 %s42, 1
        %s192 = smul.addr %s191, 256
        %s193 = scalar_lea.vmem [#allocation3], %s192
        %p194 = pneg %p55
        %p195 = pneg %p52
        %p196 = pneg %p76
        %p197 = pneg %p73
        %p198 = pneg %p97
        %p199 = pneg %p94
        %p200 = pneg %p123
        %p201 = pneg %p120
        %s202 = sand.u32 %s110, 1
        %s203 = scalar_lea.sflag [#allocation5], %s202
        %s204 = sand.u32 %s110, 1
        %s205 = scalar_lea.vmem [#allocation6], %s204
        %s206 = smul.u32 2, %s25
        %p207 = scmp.eq.s32.totalorder %s25, 0
        // Predicated region
        $region37: #{tpu_custom_call.1} parent=31 // pred_check
          %p208 = pneg %p207
        $region38: #{tpu_custom_call.1} parent=31 // pred_check_branch
          %210 = sbr.rel (%p208) target = $region40
        $region39: #{tpu_custom_call.1} parent=31 // pred_region
          %211 = vst [vmem:[#allocation2] sm:$0x1] 0.0
        $region40: #{tpu_custom_call.1} parent=31 // pred_fallthru
          _
        %v212 = vld [vmem:[%s183] sm:$0xff]
        %v213 = vld [vmem:[%s183 + $0x8] sm:$0xff]
        %v214 = vld [vmem:[%s183 + $0x10] sm:$0xff]
        %v215 = vld [vmem:[%s183 + $0x18] sm:$0xff]
        %v216 = vld [vmem:[%s183 + $0x20] sm:$0xff]
        %v217 = vld [vmem:[%s183 + $0x28] sm:$0xff]
        %v218 = vld [vmem:[%s183 + $0x30] sm:$0xff]
        %v219 = vld [vmem:[%s183 + $0x38] sm:$0xff]
        %v220 = vld [vmem:[%s183 + $0x40] sm:$0xff]
        %v221 = vld [vmem:[%s183 + $0x48] sm:$0xff]
        %v222 = vld [vmem:[%s183 + $0x50] sm:$0xff]
        %v223 = vld [vmem:[%s183 + $0x58] sm:$0xff]
        %v224 = vld [vmem:[%s183 + $0x60] sm:$0xff]
        %v225 = vld [vmem:[%s183 + $0x68] sm:$0xff]
        %v226 = vld [vmem:[%s183 + $0x70] sm:$0xff]
        %v227 = vld [vmem:[%s183 + $0x78] sm:$0xff]
        %v228 = vld [vmem:[%s183 + $0x80] sm:$0xff]
        %v229 = vld [vmem:[%s183 + $0x88] sm:$0xff]
        %v230 = vld [vmem:[%s183 + $0x90] sm:$0xff]
        %v231 = vld [vmem:[%s183 + $0x98] sm:$0xff]
        %v232 = vld [vmem:[%s183 + $0xa0] sm:$0xff]
        %v233 = vld [vmem:[%s183 + $0xa8] sm:$0xff]
        %v234 = vld [vmem:[%s183 + $0xb0] sm:$0xff]
        %v235 = vld [vmem:[%s183 + $0xb8] sm:$0xff]
        %v236 = vld [vmem:[%s183 + $0xc0] sm:$0xff]
        %v237 = vld [vmem:[%s183 + $0xc8] sm:$0xff]
        %v238 = vld [vmem:[%s183 + $0xd0] sm:$0xff]
        %v239 = vld [vmem:[%s183 + $0xd8] sm:$0xff]
        %v240 = vld [vmem:[%s183 + $0xe0] sm:$0xff]
        %v241 = vld [vmem:[%s183 + $0xe8] sm:$0xff]
        %v242 = vld [vmem:[%s183 + $0xf0] sm:$0xff]
        %v243 = vld [vmem:[%s183 + $0xf8] sm:$0xff]
        %v244 = vld [vmem:[#allocation2] sm:$0x1]
        %v245 = vadd.f32 %v212, %v213
        %246 = vadd.xlane.f32.xlu0 %v245
        %v247 = vpop.xlane.xlu0 %246
        %v248 = vadd.f32 %v214, %v215
        %249 = vadd.xlane.f32.xlu0 %v248
        %v250 = vpop.xlane.xlu0 %249
        %v251 = vadd.f32 %v216, %v217
        %252 = vadd.xlane.f32.xlu0 %v251
        %v253 = vpop.xlane.xlu0 %252
        %v254 = vadd.f32 %v218, %v219
        %255 = vadd.xlane.f32.xlu0 %v254
        %v256 = vpop.xlane.xlu0 %255
        %v257 = vadd.f32 %v220, %v221
        %258 = vadd.xlane.f32.xlu0 %v257
        %v259 = vpop.xlane.xlu0 %258
        %v260 = vadd.f32 %v222, %v223
        %261 = vadd.xlane.f32.xlu0 %v260
        %v262 = vpop.xlane.xlu0 %261
        %v263 = vadd.f32 %v224, %v225
        %264 = vadd.xlane.f32.xlu0 %v263
        %v265 = vpop.xlane.xlu0 %264
        %v266 = vadd.f32 %v226, %v227
        %267 = vadd.xlane.f32.xlu0 %v266
        %v268 = vpop.xlane.xlu0 %267
        %v269 = vadd.f32 %v228, %v229
        %270 = vadd.xlane.f32.xlu0 %v269
        %v271 = vpop.xlane.xlu0 %270
        %v272 = vadd.f32 %v230, %v231
        %273 = vadd.xlane.f32.xlu0 %v272
        %v274 = vpop.xlane.xlu0 %273
        %v275 = vadd.f32 %v232, %v233
        %276 = vadd.xlane.f32.xlu0 %v275
        %v277 = vpop.xlane.xlu0 %276
        %v278 = vadd.f32 %v234, %v235
        %279 = vadd.xlane.f32.xlu0 %v278
        %v280 = vpop.xlane.xlu0 %279
        %v281 = vadd.f32 %v236, %v237
        %282 = vadd.xlane.f32.xlu0 %v281
        %v283 = vpop.xlane.xlu0 %282
        %v284 = vadd.f32 %v238, %v239
        %285 = vadd.xlane.f32.xlu0 %v284
        %v286 = vpop.xlane.xlu0 %285
        %v287 = vadd.f32 %v240, %v241
        %288 = vadd.xlane.f32.xlu0 %v287
        %v289 = vpop.xlane.xlu0 %288
        %v290 = vadd.f32 %v242, %v243
        %291 = vadd.xlane.f32.xlu0 %v290
        %v292 = vpop.xlane.xlu0 %291
        %v309 = vperm.slane %v247, 0
        %v310 = vperm.slane %v247, 1
        %v311 = vperm.slane %v247, 2
        %v312 = vperm.slane %v247, 3
        %v313 = vperm.slane %v247, 4
        %v314 = vperm.slane %v247, 5
        %v315 = vperm.slane %v247, 6
        %v316 = vperm.slane %v247, 7
        %v317 = vperm.slane %v250, 0
        %v318 = vperm.slane %v250, 1
        %v319 = vperm.slane %v250, 2
        %v320 = vperm.slane %v250, 3
        %v321 = vperm.slane %v250, 4
        %v322 = vperm.slane %v250, 5
        %v323 = vperm.slane %v250, 6
        %v324 = vperm.slane %v250, 7
        %v325 = vperm.slane %v253, 0
        %v326 = vperm.slane %v253, 1
        %v327 = vperm.slane %v253, 2
        %v328 = vperm.slane %v253, 3
        %v329 = vperm.slane %v253, 4
        %v330 = vperm.slane %v253, 5
        %v331 = vperm.slane %v253, 6
        %v332 = vperm.slane %v253, 7
        %v333 = vperm.slane %v256, 0
        %v334 = vperm.slane %v256, 1
        %v335 = vperm.slane %v256, 2
        %v336 = vperm.slane %v256, 3
        %v337 = vperm.slane %v256, 4
        %v338 = vperm.slane %v256, 5
        %v339 = vperm.slane %v256, 6
        %v340 = vperm.slane %v256, 7
        %v341 = vperm.slane %v259, 0
        %v342 = vperm.slane %v259, 1
        %v343 = vperm.slane %v259, 2
        %v344 = vperm.slane %v259, 3
        %v345 = vperm.slane %v259, 4
        %v346 = vperm.slane %v259, 5
        %v347 = vperm.slane %v259, 6
        %v348 = vperm.slane %v259, 7
        %v349 = vperm.slane %v262, 0
        %v350 = vperm.slane %v262, 1
        %v351 = vperm.slane %v262, 2
        %v352 = vperm.slane %v262, 3
        %v353 = vperm.slane %v262, 4
        %v354 = vperm.slane %v262, 5
        %v355 = vperm.slane %v262, 6
        %v356 = vperm.slane %v262, 7
        %v357 = vperm.slane %v265, 0
        %v358 = vperm.slane %v265, 1
        %v359 = vperm.slane %v265, 2
        %v360 = vperm.slane %v265, 3
        %v361 = vperm.slane %v265, 4
        %v362 = vperm.slane %v265, 5
        %v363 = vperm.slane %v265, 6
        %v364 = vperm.slane %v265, 7
        %v365 = vperm.slane %v268, 0
        %v366 = vperm.slane %v268, 1
        %v367 = vperm.slane %v268, 2
        %v368 = vperm.slane %v268, 3
        %v369 = vperm.slane %v268, 4
        %v370 = vperm.slane %v268, 5
        %v371 = vperm.slane %v268, 6
        %v372 = vperm.slane %v268, 7
        %v373 = vperm.slane %v271, 0
        %v374 = vperm.slane %v271, 1
        %v375 = vperm.slane %v271, 2
        %v376 = vperm.slane %v271, 3
        %v377 = vperm.slane %v271, 4
        %v378 = vperm.slane %v271, 5
        %v379 = vperm.slane %v271, 6
        %v380 = vperm.slane %v271, 7
        %v381 = vperm.slane %v274, 0
        %v382 = vperm.slane %v274, 1
        %v383 = vperm.slane %v274, 2
        %v384 = vperm.slane %v274, 3
        %v385 = vperm.slane %v274, 4
        %v386 = vperm.slane %v274, 5
        %v387 = vperm.slane %v274, 6
        %v388 = vperm.slane %v274, 7
        %v389 = vperm.slane %v277, 0
        %v390 = vperm.slane %v277, 1
        %v391 = vperm.slane %v277, 2
        %v392 = vperm.slane %v277, 3
        %v393 = vperm.slane %v277, 4
        %v394 = vperm.slane %v277, 5
        %v395 = vperm.slane %v277, 6
        %v396 = vperm.slane %v277, 7
        %v397 = vperm.slane %v280, 0
        %v398 = vperm.slane %v280, 1
        %v399 = vperm.slane %v280, 2
        %v400 = vperm.slane %v280, 3
        %v401 = vperm.slane %v280, 4
        %v402 = vperm.slane %v280, 5
        %v403 = vperm.slane %v280, 6
        %v404 = vperm.slane %v280, 7
        %v405 = vperm.slane %v283, 0
        %v406 = vperm.slane %v283, 1
        %v407 = vperm.slane %v283, 2
        %v408 = vperm.slane %v283, 3
        %v409 = vperm.slane %v283, 4
        %v410 = vperm.slane %v283, 5
        %v411 = vperm.slane %v283, 6
        %v412 = vperm.slane %v283, 7
        %v413 = vperm.slane %v286, 0
        %v414 = vperm.slane %v286, 1
        %v415 = vperm.slane %v286, 2
        %v416 = vperm.slane %v286, 3
        %v417 = vperm.slane %v286, 4
        %v418 = vperm.slane %v286, 5
        %v419 = vperm.slane %v286, 6
        %v420 = vperm.slane %v286, 7
        %v421 = vperm.slane %v289, 0
        %v422 = vperm.slane %v289, 1
        %v423 = vperm.slane %v289, 2
        %v424 = vperm.slane %v289, 3
        %v425 = vperm.slane %v289, 4
        %v426 = vperm.slane %v289, 5
        %v427 = vperm.slane %v289, 6
        %v428 = vperm.slane %v289, 7
        %v429 = vperm.slane %v292, 0
        %v430 = vperm.slane %v292, 1
        %v431 = vperm.slane %v292, 2
        %v432 = vperm.slane %v292, 3
        %v433 = vperm.slane %v292, 4
        %v434 = vperm.slane %v292, 5
        %v435 = vperm.slane %v292, 6
        %v436 = vperm.slane %v292, 7
        %437 = vst [vmem:[#allocation1] ss:$9 sm:$0xff] %v309
        %s438 = scalar_lea.vmem [#allocation1], 1
        %439 = vst [vmem:[%s438] ss:$9 sm:$0xff] %v310
        %s440 = scalar_lea.vmem [#allocation1], 2
        %441 = vst [vmem:[%s440] ss:$9 sm:$0xff] %v311
        %s442 = scalar_lea.vmem [#allocation1], 3
        %443 = vst [vmem:[%s442] ss:$9 sm:$0xff] %v312
        %s444 = scalar_lea.vmem [#allocation1], 4
        %445 = vst [vmem:[%s444] ss:$9 sm:$0xff] %v313
        %s446 = scalar_lea.vmem [#allocation1], 5
        %447 = vst [vmem:[%s446] ss:$9 sm:$0xff] %v314
        %s448 = scalar_lea.vmem [#allocation1], 6
        %449 = vst [vmem:[%s448] ss:$9 sm:$0xff] %v315
        %s450 = scalar_lea.vmem [#allocation1], 7
        %451 = vst [vmem:[%s450] ss:$9 sm:$0xff] %v316
        %v452 = vld [vmem:[#allocation1] sm:$0xff]
        %453 = vst [vmem:[#allocation1] ss:$9 sm:$0xff] %v317
        %454 = vst [vmem:[%s438] ss:$9 sm:$0xff] %v318
        %455 = vst [vmem:[%s440] ss:$9 sm:$0xff] %v319
        %456 = vst [vmem:[%s442] ss:$9 sm:$0xff] %v320
        %457 = vst [vmem:[%s444] ss:$9 sm:$0xff] %v321
        %458 = vst [vmem:[%s446] ss:$9 sm:$0xff] %v322
        %459 = vst [vmem:[%s448] ss:$9 sm:$0xff] %v323
        %460 = vst [vmem:[%s450] ss:$9 sm:$0xff] %v324
        %v461 = vld [vmem:[#allocation1] sm:$0xff]
        %462 = vst [vmem:[#allocation1] ss:$9 sm:$0xff] %v325
        %463 = vst [vmem:[%s438] ss:$9 sm:$0xff] %v326
        %464 = vst [vmem:[%s440] ss:$9 sm:$0xff] %v327
        %465 = vst [vmem:[%s442] ss:$9 sm:$0xff] %v328
        %466 = vst [vmem:[%s444] ss:$9 sm:$0xff] %v329
        %467 = vst [vmem:[%s446] ss:$9 sm:$0xff] %v330
        %468 = vst [vmem:[%s448] ss:$9 sm:$0xff] %v331
        %469 = vst [vmem:[%s450] ss:$9 sm:$0xff] %v332
        %v470 = vld [vmem:[#allocation1] sm:$0xff]
        %471 = vst [vmem:[#allocation1] ss:$9 sm:$0xff] %v333
        %472 = vst [vmem:[%s438] ss:$9 sm:$0xff] %v334
        %473 = vst [vmem:[%s440] ss:$9 sm:$0xff] %v335
        %474 = vst [vmem:[%s442] ss:$9 sm:$0xff] %v336
        %475 = vst [vmem:[%s444] ss:$9 sm:$0xff] %v337
        %476 = vst [vmem:[%s446] ss:$9 sm:$0xff] %v338
        %477 = vst [vmem:[%s448] ss:$9 sm:$0xff] %v339
        %478 = vst [vmem:[%s450] ss:$9 sm:$0xff] %v340
        %v479 = vld [vmem:[#allocation1] sm:$0xff]
        %480 = vst [vmem:[#allocation1] ss:$9 sm:$0xff] %v341
        %481 = vst [vmem:[%s438] ss:$9 sm:$0xff] %v342
        %482 = vst [vmem:[%s440] ss:$9 sm:$0xff] %v343
        %483 = vst [vmem:[%s442] ss:$9 sm:$0xff] %v344
        %484 = vst [vmem:[%s444] ss:$9 sm:$0xff] %v345
        %485 = vst [vmem:[%s446] ss:$9 sm:$0xff] %v346
        %486 = vst [vmem:[%s448] ss:$9 sm:$0xff] %v347
        %487 = vst [vmem:[%s450] ss:$9 sm:$0xff] %v348
        %v488 = vld [vmem:[#allocation1] sm:$0xff]
        %489 = vst [vmem:[#allocation1] ss:$9 sm:$0xff] %v349
        %490 = vst [vmem:[%s438] ss:$9 sm:$0xff] %v350
        %491 = vst [vmem:[%s440] ss:$9 sm:$0xff] %v351
        %492 = vst [vmem:[%s442] ss:$9 sm:$0xff] %v352
        %493 = vst [vmem:[%s444] ss:$9 sm:$0xff] %v353
        %494 = vst [vmem:[%s446] ss:$9 sm:$0xff] %v354
        %495 = vst [vmem:[%s448] ss:$9 sm:$0xff] %v355
        %496 = vst [vmem:[%s450] ss:$9 sm:$0xff] %v356
        %v497 = vld [vmem:[#allocation1] sm:$0xff]
        %498 = vst [vmem:[#allocation1] ss:$9 sm:$0xff] %v357
        %499 = vst [vmem:[%s438] ss:$9 sm:$0xff] %v358
        %500 = vst [vmem:[%s440] ss:$9 sm:$0xff] %v359
        %501 = vst [vmem:[%s442] ss:$9 sm:$0xff] %v360
        %502 = vst [vmem:[%s444] ss:$9 sm:$0xff] %v361
        %503 = vst [vmem:[%s446] ss:$9 sm:$0xff] %v362
        %504 = vst [vmem:[%s448] ss:$9 sm:$0xff] %v363
        %505 = vst [vmem:[%s450] ss:$9 sm:$0xff] %v364
        %v506 = vld [vmem:[#allocation1] sm:$0xff]
        %507 = vst [vmem:[#allocation1] ss:$9 sm:$0xff] %v365
        %508 = vst [vmem:[%s438] ss:$9 sm:$0xff] %v366
        %509 = vst [vmem:[%s440] ss:$9 sm:$0xff] %v367
        %510 = vst [vmem:[%s442] ss:$9 sm:$0xff] %v368
        %511 = vst [vmem:[%s444] ss:$9 sm:$0xff] %v369
        %512 = vst [vmem:[%s446] ss:$9 sm:$0xff] %v370
        %513 = vst [vmem:[%s448] ss:$9 sm:$0xff] %v371
        %514 = vst [vmem:[%s450] ss:$9 sm:$0xff] %v372
        %v515 = vld [vmem:[#allocation1] sm:$0xff]
        %516 = vst [vmem:[#allocation1] ss:$9 sm:$0xff] %v373
        %517 = vst [vmem:[%s438] ss:$9 sm:$0xff] %v374
        %518 = vst [vmem:[%s440] ss:$9 sm:$0xff] %v375
        %519 = vst [vmem:[%s442] ss:$9 sm:$0xff] %v376
        %520 = vst [vmem:[%s444] ss:$9 sm:$0xff] %v377
        %521 = vst [vmem:[%s446] ss:$9 sm:$0xff] %v378
        %522 = vst [vmem:[%s448] ss:$9 sm:$0xff] %v379
        %523 = vst [vmem:[%s450] ss:$9 sm:$0xff] %v380
        %v524 = vld [vmem:[#allocation1] sm:$0xff]
        %525 = vst [vmem:[#allocation1] ss:$9 sm:$0xff] %v381
        %526 = vst [vmem:[%s438] ss:$9 sm:$0xff] %v382
        %527 = vst [vmem:[%s440] ss:$9 sm:$0xff] %v383
        %528 = vst [vmem:[%s442] ss:$9 sm:$0xff] %v384
        %529 = vst [vmem:[%s444] ss:$9 sm:$0xff] %v385
        %530 = vst [vmem:[%s446] ss:$9 sm:$0xff] %v386
        %531 = vst [vmem:[%s448] ss:$9 sm:$0xff] %v387
        %532 = vst [vmem:[%s450] ss:$9 sm:$0xff] %v388
        %v533 = vld [vmem:[#allocation1] sm:$0xff]
        %534 = vst [vmem:[#allocation1] ss:$9 sm:$0xff] %v389
        %535 = vst [vmem:[%s438] ss:$9 sm:$0xff] %v390
        %536 = vst [vmem:[%s440] ss:$9 sm:$0xff] %v391
        %537 = vst [vmem:[%s442] ss:$9 sm:$0xff] %v392
        %538 = vst [vmem:[%s444] ss:$9 sm:$0xff] %v393
        %539 = vst [vmem:[%s446] ss:$9 sm:$0xff] %v394
        %540 = vst [vmem:[%s448] ss:$9 sm:$0xff] %v395
        %541 = vst [vmem:[%s450] ss:$9 sm:$0xff] %v396
        %v542 = vld [vmem:[#allocation1] sm:$0xff]
        %543 = vst [vmem:[#allocation1] ss:$9 sm:$0xff] %v397
        %544 = vst [vmem:[%s438] ss:$9 sm:$0xff] %v398
        %545 = vst [vmem:[%s440] ss:$9 sm:$0xff] %v399
        %546 = vst [vmem:[%s442] ss:$9 sm:$0xff] %v400
        %547 = vst [vmem:[%s444] ss:$9 sm:$0xff] %v401
        %548 = vst [vmem:[%s446] ss:$9 sm:$0xff] %v402
        %549 = vst [vmem:[%s448] ss:$9 sm:$0xff] %v403
        %550 = vst [vmem:[%s450] ss:$9 sm:$0xff] %v404
        %v551 = vld [vmem:[#allocation1] sm:$0xff]
        %552 = vst [vmem:[#allocation1] ss:$9 sm:$0xff] %v405
        %553 = vst [vmem:[%s438] ss:$9 sm:$0xff] %v406
        %554 = vst [vmem:[%s440] ss:$9 sm:$0xff] %v407
        %555 = vst [vmem:[%s442] ss:$9 sm:$0xff] %v408
        %556 = vst [vmem:[%s444] ss:$9 sm:$0xff] %v409
        %557 = vst [vmem:[%s446] ss:$9 sm:$0xff] %v410
        %558 = vst [vmem:[%s448] ss:$9 sm:$0xff] %v411
        %559 = vst [vmem:[%s450] ss:$9 sm:$0xff] %v412
        %v560 = vld [vmem:[#allocation1] sm:$0xff]
        %561 = vst [vmem:[#allocation1] ss:$9 sm:$0xff] %v413
        %562 = vst [vmem:[%s438] ss:$9 sm:$0xff] %v414
        %563 = vst [vmem:[%s440] ss:$9 sm:$0xff] %v415
        %564 = vst [vmem:[%s442] ss:$9 sm:$0xff] %v416
        %565 = vst [vmem:[%s444] ss:$9 sm:$0xff] %v417
        %566 = vst [vmem:[%s446] ss:$9 sm:$0xff] %v418
        %567 = vst [vmem:[%s448] ss:$9 sm:$0xff] %v419
        %568 = vst [vmem:[%s450] ss:$9 sm:$0xff] %v420
        %v569 = vld [vmem:[#allocation1] sm:$0xff]
        %570 = vst [vmem:[#allocation1] ss:$9 sm:$0xff] %v421
        %571 = vst [vmem:[%s438] ss:$9 sm:$0xff] %v422
        %572 = vst [vmem:[%s440] ss:$9 sm:$0xff] %v423
        %573 = vst [vmem:[%s442] ss:$9 sm:$0xff] %v424
        %574 = vst [vmem:[%s444] ss:$9 sm:$0xff] %v425
        %575 = vst [vmem:[%s446] ss:$9 sm:$0xff] %v426
        %576 = vst [vmem:[%s448] ss:$9 sm:$0xff] %v427
        %577 = vst [vmem:[%s450] ss:$9 sm:$0xff] %v428
        %v578 = vld [vmem:[#allocation1] sm:$0xff]
        %579 = vst [vmem:[#allocation1] ss:$9 sm:$0xff] %v429
        %580 = vst [vmem:[%s438] ss:$9 sm:$0xff] %v430
        %581 = vst [vmem:[%s440] ss:$9 sm:$0xff] %v431
        %582 = vst [vmem:[%s442] ss:$9 sm:$0xff] %v432
        %583 = vst [vmem:[%s444] ss:$9 sm:$0xff] %v433
        %584 = vst [vmem:[%s446] ss:$9 sm:$0xff] %v434
        %585 = vst [vmem:[%s448] ss:$9 sm:$0xff] %v435
        %586 = vst [vmem:[%s450] ss:$9 sm:$0xff] %v436
        %v587 = vld [vmem:[#allocation1] sm:$0xff]
        %588 = vset.pattern.permute.xlu0 0
        %589 = vperm.xlu0 %588, %v452
        %v590 = vpop.permute.xlu0 %589
        %591 = vset.pattern.permute.xlu0 0
        %592 = vperm.xlu0 %591, %v461
        %v593 = vpop.permute.xlu0 %592
        %594 = vset.pattern.permute.xlu0 0
        %595 = vperm.xlu0 %594, %v470
        %v596 = vpop.permute.xlu0 %595
        %597 = vset.pattern.permute.xlu0 0
        %598 = vperm.xlu0 %597, %v479
        %v599 = vpop.permute.xlu0 %598
        %600 = vset.pattern.permute.xlu0 0
        %601 = vperm.xlu0 %600, %v488
        %v602 = vpop.permute.xlu0 %601
        %603 = vset.pattern.permute.xlu0 0
        %604 = vperm.xlu0 %603, %v497
        %v605 = vpop.permute.xlu0 %604
        %606 = vset.pattern.permute.xlu0 0
        %607 = vperm.xlu0 %606, %v506
        %v608 = vpop.permute.xlu0 %607
        %609 = vset.pattern.permute.xlu0 0
        %610 = vperm.xlu0 %609, %v515
        %v611 = vpop.permute.xlu0 %610
        %612 = vset.pattern.permute.xlu0 0
        %613 = vperm.xlu0 %612, %v524
        %v614 = vpop.permute.xlu0 %613
        %615 = vset.pattern.permute.xlu0 0
        %616 = vperm.xlu0 %615, %v533
        %v617 = vpop.permute.xlu0 %616
        %618 = vset.pattern.permute.xlu0 0
        %619 = vperm.xlu0 %618, %v542
        %v620 = vpop.permute.xlu0 %619
        %621 = vset.pattern.permute.xlu0 0
        %622 = vperm.xlu0 %621, %v551
        %v623 = vpop.permute.xlu0 %622
        %624 = vset.pattern.permute.xlu0 0
        %625 = vperm.xlu0 %624, %v560
        %v626 = vpop.permute.xlu0 %625
        %627 = vset.pattern.permute.xlu0 0
        %628 = vperm.xlu0 %627, %v569
        %v629 = vpop.permute.xlu0 %628
        %630 = vset.pattern.permute.xlu0 0
        %631 = vperm.xlu0 %630, %v578
        %v632 = vpop.permute.xlu0 %631
        %633 = vset.pattern.permute.xlu0 0
        %634 = vperm.xlu0 %633, %v587
        %v635 = vpop.permute.xlu0 %634
        %v636 = vlaneseq
        %v637 = vand.u32 %v636, 127
        %v638 = vperm.slane %v590, %v637
        %v639 = vadd.s32 %v637, 4294967288
        %v640 = vperm.slane %v593, %v639
        %vm641 = vcmask 130112
        %v642 = vsel %vm641, %v640, %v638
        %v643 = vadd.s32 %v637, 4294967280
        %v644 = vperm.slane %v596, %v643
        %vm645 = vcmask 195712
        %v646 = vsel %vm645, %v644, %v642
        %v647 = vadd.s32 %v637, 4294967272
        %v648 = vperm.slane %v599, %v647
        %vm649 = vcmask 261312
        %v650 = vsel %vm649, %v648, %v646
        %v651 = vadd.s32 %v637, 4294967264
        %v652 = vperm.slane %v602, %v651
        %vm653 = vcmask 326912
        %v654 = vsel %vm653, %v652, %v650
        %v655 = vadd.s32 %v637, 4294967256
        %v656 = vperm.slane %v605, %v655
        %vm657 = vcmask 392512
        %v658 = vsel %vm657, %v656, %v654
        %v659 = vadd.s32 %v637, 4294967248
        %v660 = vperm.slane %v608, %v659
        %vm661 = vcmask 458112
        %v662 = vsel %vm661, %v660, %v658
        %v663 = vadd.s32 %v637, 4294967240
        %v664 = vperm.slane %v611, %v663
        %vm665 = vcmask 523712
        %v666 = vsel %vm665, %v664, %v662
        %v667 = vadd.s32 %v637, 4294967232
        %v668 = vperm.slane %v614, %v667
        %vm669 = vcmask 589312
        %v670 = vsel %vm669, %v668, %v666
        %v671 = vadd.s32 %v637, 4294967224
        %v672 = vperm.slane %v617, %v671
        %vm673 = vcmask 654912
        %v674 = vsel %vm673, %v672, %v670
        %v675 = vadd.s32 %v637, 4294967216
        %v676 = vperm.slane %v620, %v675
        %vm677 = vcmask 720512
        %v678 = vsel %vm677, %v676, %v674
        %v679 = vadd.s32 %v637, 4294967208
        %v680 = vperm.slane %v623, %v679
        %vm681 = vcmask 786112
        %v682 = vsel %vm681, %v680, %v678
        %v683 = vadd.s32 %v637, 4294967200
        %v684 = vperm.slane %v626, %v683
        %vm685 = vcmask 851712
        %v686 = vsel %vm685, %v684, %v682
        %v687 = vadd.s32 %v637, 4294967192
        %v688 = vperm.slane %v629, %v687
        %vm689 = vcmask 917312
        %v690 = vsel %vm689, %v688, %v686
        %v691 = vadd.s32 %v637, 4294967184
        %v692 = vperm.slane %v632, %v691
        %vm693 = vcmask 982912
        %v694 = vsel %vm693, %v692, %v690
        %v695 = vadd.s32 %v637, 4294967176
        %v696 = vperm.slane %v635, %v695
        %vm697 = vcmask 1048512
        %v698 = vsel %vm697, %v696, %v694
        %v700 = vadd.f32 %v244, %v698
        %701 = vst [vmem:[#allocation2] sm:$0x1] %v700
        // Predicated region
        $region41: #{tpu_custom_call.1} parent=31 // pred_check
          %p702 = pneg %p207
        $region42: #{tpu_custom_call.1} parent=31 // pred_check_branch
          %704 = sbr.rel (%p702) target = $region44
        $region43: #{tpu_custom_call.1} parent=31 // pred_region
          %v705 = vld [vmem:[#allocation2] sm:$0x1]
          %v706 = vmul.f32 %v705, 0.00390625
          %v707 = vld [vmem:[%s1] sm:$0xff]
          %v708 = vld [vmem:[%s1 + $0x8] sm:$0xff]
          %v709 = vld [vmem:[%s1 + $0x10] sm:$0xff]
          %v710 = vld [vmem:[%s1 + $0x18] sm:$0xff]
          %v711 = vld [vmem:[%s1 + $0x20] sm:$0xff]
          %v712 = vld [vmem:[%s1 + $0x28] sm:$0xff]
          %v713 = vld [vmem:[%s1 + $0x30] sm:$0xff]
          %v714 = vld [vmem:[%s1 + $0x38] sm:$0xff]
          %v715 = vld [vmem:[%s1 + $0x40] sm:$0xff]
          %v716 = vld [vmem:[%s1 + $0x48] sm:$0xff]
          %v717 = vld [vmem:[%s1 + $0x50] sm:$0xff]
          %v718 = vld [vmem:[%s1 + $0x58] sm:$0xff]
          %v719 = vld [vmem:[%s1 + $0x60] sm:$0xff]
          %v720 = vld [vmem:[%s1 + $0x68] sm:$0xff]
          %v721 = vld [vmem:[%s1 + $0x70] sm:$0xff]
          %v722 = vld [vmem:[%s1 + $0x78] sm:$0xff]
          %723 = vmatpush.msra.mxu0 %v722
          %724 = vmatpush.msra.mxu0 %v721
          %725 = vmatpush.msra.mxu0 %v720
          %726 = vmatpush.msra.mxu0 %v719
          %727 = vmatpush.msra.mxu0 %v718
          %728 = vmatpush.msra.mxu0 %v717
          %729 = vmatpush.msra.mxu0 %v716
          %730 = vmatpush.msra.mxu0 %v715
          %731 = vmatpush.msra.mxu0 %v714
          %732 = vmatpush.msra.mxu0 %v713
          %733 = vmatpush.msra.mxu0 %v712
          %734 = vmatpush.msra.mxu0 %v711
          %735 = vmatpush.msra.mxu0 %v710
          %736 = vmatpush.msra.mxu0 %v709
          %737 = vmatpush.msra.mxu0 %v708
          %738 = vmatpush.msra.mxu0 %v707
          %739 = vmatmul.f32.gmra.mxu0 %v706
          %v740 = vpop.f32.mrf.mxu0
          %v741 = vadd.f32 0.0, %v740
          %742 = vdwg.mxu0
          %v743 = vmax.f32 %v741, 0.0
          %v744 = vld [vmem:[%s2] sm:$0xff]
          %vm745 = vcmask 64512
          %v747 = vsel %vm745, %v743, 0
          %749 = vmatpush.msra.mxu0 0.0
          %750 = vmatpush.msra.mxu0 0.0
          %751 = vmatpush.msra.mxu0 0.0
          %752 = vmatpush.msra.mxu0 0.0
          %753 = vmatpush.msra.mxu0 0.0
          %754 = vmatpush.msra.mxu0 0.0
          %755 = vmatpush.msra.mxu0 0.0
          %756 = vmatpush.msra.mxu0 0.0
          %757 = vmatpush.msra.mxu0 0.0
          %758 = vmatpush.msra.mxu0 0.0
          %759 = vmatpush.msra.mxu0 0.0
          %760 = vmatpush.msra.mxu0 0.0
          %761 = vmatpush.msra.mxu0 0.0
          %762 = vmatpush.msra.mxu0 0.0
          %763 = vmatpush.msra.mxu0 0.0
          %764 = vmatpush.msra.mxu0 %v744
          %765 = vmatmul.f32.gmra.mxu0 %v747
          %v766 = vpop.f32.mrf.mxu0
          %v767 = vadd.f32 0.0, %v766
          %768 = vdwg.mxu0
          %v769 = vxor.u32 %v767, 2147483648
          %v770 = vmul.f32 %v769, 1.442695
          %v771 = vpow.pop %v770
          %v772 = vadd.f32 %v771, 1.0
          %v773 = vrcp.pop %v772
          %v774 = vmul.f32 %v772, %v773
          %v775 = vsub.f32 1.0, %v774
          %v776 = vmul.f32 %v773, %v775
          %v777 = vadd.f32 %v773, %v776
          %vm778 = vweird.f32 %v772
          %vm779 = vweird.f32 %v773
          %vm780 = vmor %vm778, %vm779
          %v781 = vsel %vm780, %v773, %v777
          %v782 = vand.u32 2147483647, %v772
          %vm783 = vcmp.eq.f32.partialorder %v782, 8.507059e+37
          %v784 = vand.u32 %v772, 2147483648
          %v785 = vor.u32 1.1754944e-38, %v784
          %v786 = vsel %vm783, %v785, %v781
          %v787 = vmul.f32 1.0, %v786
          %788 = vst [vmem:[%s205] sm:$0x1] %v787
        $region44: #{tpu_custom_call.1} parent=31 // pred_fallthru
          _
        %s789 = sand.u32 %s110, 1
        %s790 = scalar_lea.sflag [#allocation5], %s789
        %s791 = sand.u32 %s110, 1
        %s792 = scalar_lea.vmem [#allocation6], %s791
        // Predicated region
        $region45: #{tpu_custom_call.1} parent=31 // pred_check
          %p793 = pneg %p120
        $region46: #{tpu_custom_call.1} parent=31 // pred_check_branch
          %795 = sbr.rel (%p793) target = $region48
        $region47: #{tpu_custom_call.1} parent=31 // pred_region
          %797 = vsyncadd %s790, 0
          %s798 = scalar_lea.hbm %s3, %s24
          %s800 = sshll.u32 %s792, 4
          %s801 = int_to_ptr.vmem [resolvable:$true] %s800
          %s802 = sshll.u32 %s798, 4
          %s803 = int_to_ptr.hbm [resolvable:$true] %s802
          %805 = dma.vmem_to_hbm [thread:$0]  %s801, 16, %s803, %s790
        $region48: #{tpu_custom_call.1} parent=31 // pred_fallthru
          _
      $region32: #{tpu_custom_call.1} parent=5 // pred_fallthru
        _
      %p806 = scmp.le.s32.totalorder 2, %s15
      // Predicated region
      $region49: #{tpu_custom_call.1} parent=5 // pred_check
        %p807 = pneg %p806
      $region50: #{tpu_custom_call.1} parent=5 // pred_check_branch
        %809 = sbr.rel (%p807) target = $region52
      $region51: #{tpu_custom_call.1} parent=5 // pred_region
        %s810 = ssub.s32 %s15, 2
        // Predicated region
        $region53: #{tpu_custom_call.1} parent=51 // pred_check
          %p811 = pneg %p126
        $region54: #{tpu_custom_call.1} parent=51 // pred_check_branch
          %813 = sbr.rel (%p811) target = $region56
        $region55: #{tpu_custom_call.1} parent=51 // pred_region
          %s814 = sand.u32 %s111, 1
          %s815 = scalar_lea.sflag [#allocation5], %s814
          %s816 = sand.u32 %s111, 1
          %s817 = scalar_lea.vmem [#allocation6], %s816
          %819 = dma.done %s815, 16
        $region56: #{tpu_custom_call.1} parent=51 // pred_fallthru
          _
      $region52: #{tpu_custom_call.1} parent=5 // pred_fallthru
        _
    $region6: #{tpu_custom_call.1} parent=1 // loop_footer
      %s19 = sadd.s32 1, %s15
    $region7: #{tpu_custom_call.1} parent=1 // loop_footer_branch
      %14 = sbr.rel target = $region3
    $region8: #{tpu_custom_call.1} parent=1 // loop_exit
      _
    %820 = vsyncpa [#allocation4], 1
    %s821 = scalar_lea.sflag [#allocation4], 1
    %822 = vsyncpa %s821, 1
    %823 = vsyncpa [#allocation5], 1
    %s824 = scalar_lea.sflag [#allocation5], 1
    %825 = vsyncpa %s824, 1

</llo_original>
